<compile_context>
chip_gen: v5e
topology: v5e:2x2
jax: 0.10.0
libtpu: 0.0.40
codegen_flags: <defaults>
</compile_context>

<pallas_src>
import math

import jax
import jax.numpy as jnp
from jax.experimental import pallas as pl
from jax.experimental.pallas import tpu as pltpu


def _round_up(x, m):
    return ((x + m - 1) // m) * m


def _make_fused_heads_kernel(n_tokens, seg_offsets):
    """Fused matmul + per-head stores.  seg_offsets are 128-aligned."""

    def kernel(x_ref, w_ref, b_ref, *o_refs):
        # x_ref: (tm, H) f32 -> cast to bf16 in-kernel (no wrapper HBM pass).
        x = x_ref[...].astype(jnp.bfloat16)
        # MXU matmul with f32 accumulation; bias add in f32.
        acc = jnp.dot(x, w_ref[...], preferred_element_type=jnp.float32)
        acc = acc + b_ref[...]
        # Per-head stores: aligned slice starts, exact (unpadded) widths.
        for o_ref, nt, off in zip(o_refs, n_tokens, seg_offsets):
            o_ref[...] = acc[:, off:off + nt].astype(o_ref.dtype)

    return kernel


def init_mlm_params(key, hidden_size, n_tokens):
    """Deterministic nn.Linear-style init: U(-1/sqrt(H), 1/sqrt(H)).

    Weights stored as (H, N) (i.e. PyTorch weight.T), bias as (N,).
    """
    params = []
    bound = 1.0 / math.sqrt(hidden_size)
    for nt in n_tokens:
        key, kw, kb = jax.random.split(key, 3)
        w = jax.random.uniform(kw, (hidden_size, nt), jnp.float32, -bound, bound)
        b = jax.random.uniform(kb, (nt,), jnp.float32, -bound, bound)
        params.append((w, b))
    return params


def pack_mlm_params(params, *, lane_align=128):
    """Pack per-head W/b along N; each head's segment padded to lane_align.

    Segment starts are lane_align-aligned so the kernel's accumulator slices
    are aligned; per-head outputs themselves stay unpadded.
    """
    n_tokens = tuple(w.shape[1] for (w, _) in params)
    H = params[0][0].shape[0]
    seg_offsets = []
    off = 0
    for nt in n_tokens:
        seg_offsets.append(off)
        off += _round_up(nt, lane_align)
    n_seg = off

    w_pad = jnp.zeros((H, n_seg), jnp.float32)
    b_pad = jnp.zeros((1, n_seg), jnp.float32)
    for (w, b), o, nt in zip(params, seg_offsets, n_tokens):
        w_pad = w_pad.at[:, o:o + nt].set(w)
        b_pad = b_pad.at[0, o:o + nt].set(b)
    # bf16 weights (MXU native), f32 bias (added after f32 accumulation).
    return w_pad.astype(jnp.bfloat16), b_pad, n_tokens, tuple(seg_offsets)


def _fused_heads(x, w_bf16, b_f32, n_tokens, seg_offsets, *,
                 tm_max=1024, out_dtype=jnp.float32):
    """x: (M, H) f32 -> tuple of (M, n_tokens[i]) logits via one pallas_call."""
    M, H = x.shape
    Hw, N_seg = w_bf16.shape
    assert H == Hw
    N_total = sum(n_tokens)
    out_bytes = jnp.dtype(out_dtype).itemsize

    # Generation-aware VMEM budget (v5e/v6e: 128 MiB, v7x: 64 MiB physical).
    try:
        vmem_cap = int(getattr(pltpu.get_tpu_info(), "vmem_capacity_bytes",
                               64 << 20))
    except Exception:  # pragma: no cover - info query unavailable
        vmem_cap = 64 << 20
    vmem_budget = vmem_cap // 2

    # Row tile: single grid step for small M; otherwise aim for >= 8 grid
    # steps (pipelining + even v7x megacore split), capped at tm_max.
    if M <= tm_max:
        tm = _round_up(M, 8)
    else:
        tm = min(tm_max, _round_up(pl.cdiv(M, 8), 8))

    def footprint(t):
        return (2 * t * H * 4                        # x tiles (double-buffered)
                + 2 * (H * N_seg * 2 + N_seg * 4)    # resident W / bias
                + 2 * t * N_total * out_bytes)       # per-head out tiles

    # Shrink the tile (not the limit) if it would not fit the VMEM budget.
    while tm > 8 and footprint(tm) > vmem_budget:
        tm = max(8, _round_up(tm // 2, 8))

    grid_m = pl.cdiv(M, tm)
    vmem_limit = int(min(max(2 * footprint(tm), 16 << 20), vmem_budget))

    cost = pl.CostEstimate(
        flops=2 * M * H * N_seg,
        transcendentals=0,
        bytes_accessed=(M * H * 4 + H * N_seg * 2 + N_seg * 4
                        + M * N_total * out_bytes),
    )

    kernel = _make_fused_heads_kernel(n_tokens, seg_offsets)
    out_shape = tuple(jax.ShapeDtypeStruct((M, nt), out_dtype)
                      for nt in n_tokens)
    out_specs = tuple(pl.BlockSpec((tm, nt), lambda i: (i, 0))
                      for nt in n_tokens)

    return pl.pallas_call(
        kernel,
        out_shape=out_shape,
        grid_spec=pltpu.PrefetchScalarGridSpec(
            num_scalar_prefetch=0,
            grid=(grid_m,),
            in_specs=[
                pl.BlockSpec((tm, H), lambda i: (i, 0)),     # x row tile
                pl.BlockSpec((H, N_seg), lambda i: (0, 0)),  # resident W
                pl.BlockSpec((1, N_seg), lambda i: (0, 0)),  # resident bias
            ],
            out_specs=out_specs,
        ),
        compiler_params=pltpu.CompilerParams(
            dimension_semantics=("parallel",),
            vmem_limit_bytes=vmem_limit,
        ),
        cost_estimate=cost,
    )(x, w_bf16, b_f32)


def mlm_forward(y, packed, *, tm_max=1024, out_dtype=jnp.float32):
    """y: (B, S, H) last hidden states -> list of (B, S, n_tokens[i]) logits."""
    # TODO(synk): the PyTorch module receives `y.hidden_states[-1]` from a
    # BERT backbone; here we take that tensor directly as the input.
    w_bf16, b_f32, n_tokens, seg_offsets = packed
    B, S, H = y.shape
    M = B * S
    x = y.reshape(M, H)  # free reshape; no wrapper-side cast/pad of x
    outs = _fused_heads(x, w_bf16, b_f32, n_tokens, seg_offsets,
                        tm_max=tm_max, out_dtype=out_dtype)
    return [o.reshape(B, S, nt) for o, nt in zip(outs, n_tokens)]


if __name__ == "__main__":
    # CP token families (Bar, Position, Pitch, Duration) with small test vocabs.
    B, S, H = 2, 8, 32
    n_tokens = [16, 24, 48, 32]

    key = jax.random.PRNGKey(0)
    key, ky = jax.random.split(key)
    y = jax.random.normal(ky, (B, S, H), jnp.float32)   # last hidden states

    params = init_mlm_params(key, H, n_tokens)
    packed = pack_mlm_params(params)

    outs = mlm_forward(y, packed)
    outs = [jax.block_until_ready(o) for o in outs]

    # Reference checks (plain JAX).
    ok = True
    y_bf = y.astype(jnp.bfloat16).astype(jnp.float32)
    for o, (w, b), nt in zip(outs, params, n_tokens):
        w_bf = w.astype(jnp.bfloat16).astype(jnp.float32)
        # Exact-path reference: same bf16-rounded operands, f32 accumulation.
        ref_bf = jnp.einsum("bsh,hn->bsn", y_bf, w_bf) + b
        # Module-semantics reference: full f32 (loose tol covers bf16 rounding).
        ref_f32 = jnp.einsum("bsh,hn->bsn", y, w) + b
        ok = ok and (o.shape == (B, S, nt))
        ok = ok and bool(jnp.allclose(o, ref_bf, atol=2e-3, rtol=2e-3))
        ok = ok and bool(jnp.allclose(o, ref_f32, atol=5e-2, rtol=5e-2))

    print("KERNEL_OK" if ok else "KERNEL_MISMATCH")
</pallas_src>

<mosaic_0001>
module attributes {stable_mosaic.version = 11 : i64} {
  func.func @kernel(%arg0: i32, %arg1: memref<16x32xf32, #tpu.memory_space<vmem>>, %arg2: memref<32x512xbf16, #tpu.memory_space<vmem>>, %arg3: memref<1x512xf32, #tpu.memory_space<vmem>>, %arg4: memref<16x16xf32, #tpu.memory_space<vmem>>, %arg5: memref<16x24xf32, #tpu.memory_space<vmem>>, %arg6: memref<16x48xf32, #tpu.memory_space<vmem>>, %arg7: memref<16x32xf32, #tpu.memory_space<vmem>>) attributes {dimension_semantics = [#tpu.dimension_semantics<parallel>], iteration_bounds = array<i64: 1>, scalar_prefetch = 0 : i64, scratch_operands = 0 : i64, tpu.core_type = #tpu.core_type<tc>, window_params = [{transform_indices = @transform_0, window_bounds = array<i64: 16, 32>}, {pipeline_mode = #tpu.pipeline_mode<synchronous>, transform_indices = @transform_1, window_bounds = array<i64: 32, 512>}, {pipeline_mode = #tpu.pipeline_mode<synchronous>, transform_indices = @transform_2, window_bounds = array<i64: 1, 512>}, {transform_indices = @transform_3, window_bounds = array<i64: 16, 16>}, {transform_indices = @transform_4, window_bounds = array<i64: 16, 24>}, {transform_indices = @transform_5, window_bounds = array<i64: 16, 48>}, {transform_indices = @transform_6, window_bounds = array<i64: 16, 32>}]} {
    %c0 = arith.constant 0 : index
    %c0_0 = arith.constant 0 : index
    %0 = vector.load %arg1[%c0, %c0_0] : memref<16x32xf32, #tpu.memory_space<vmem>>, vector<16x32xf32>
    %1 = arith.truncf %0 : vector<16x32xf32> to vector<16x32xbf16>
    %c0_1 = arith.constant 0 : index
    %c0_2 = arith.constant 0 : index
    %2 = vector.load %arg2[%c0_1, %c0_2] : memref<32x512xbf16, #tpu.memory_space<vmem>>, vector<32x512xbf16>
    %cst = arith.constant dense<0.000000e+00> : vector<16x512xf32>
    %3 = tpu.matmul %1, %2, %cst {dimension_numbers = #tpu.dot_dimension_numbers<[1], [0], [0], [1], [0, 0, 1, 1], [], []>} : vector<16x32xbf16>, vector<32x512xbf16>, vector<16x512xf32> -> vector<16x512xf32>
    %c0_3 = arith.constant 0 : index
    %c0_4 = arith.constant 0 : index
    %4 = vector.load %arg3[%c0_3, %c0_4] : memref<1x512xf32, #tpu.memory_space<vmem>>, vector<1x512xf32>
    %5 = vector.broadcast %4 : vector<1x512xf32> to vector<16x512xf32>
    %6 = arith.addf %3, %5 : vector<16x512xf32>
    %7 = vector.extract_strided_slice %6 {offsets = [0, 0], sizes = [16, 16], strides = [1, 1]} : vector<16x512xf32> to vector<16x16xf32>
    %c0_5 = arith.constant 0 : index
    %c0_6 = arith.constant 0 : index
    %8 = vector.load %arg4[%c0_5, %c0_6] : memref<16x16xf32, #tpu.memory_space<vmem>>, vector<16x16xf32>
    tpu.vector_store %arg4[%c0_5, %c0_6], %7 {strides = array<i32>} : memref<16x16xf32, #tpu.memory_space<vmem>>, vector<16x16xf32>,
    %9 = vector.extract_strided_slice %6 {offsets = [0, 128], sizes = [16, 24], strides = [1, 1]} : vector<16x512xf32> to vector<16x24xf32>
    %c0_7 = arith.constant 0 : index
    %c0_8 = arith.constant 0 : index
    %10 = vector.load %arg5[%c0_7, %c0_8] : memref<16x24xf32, #tpu.memory_space<vmem>>, vector<16x24xf32>
    tpu.vector_store %arg5[%c0_7, %c0_8], %9 {strides = array<i32>} : memref<16x24xf32, #tpu.memory_space<vmem>>, vector<16x24xf32>,
    %11 = vector.extract_strided_slice %6 {offsets = [0, 256], sizes = [16, 48], strides = [1, 1]} : vector<16x512xf32> to vector<16x48xf32>
    %c0_9 = arith.constant 0 : index
    %c0_10 = arith.constant 0 : index
    %12 = vector.load %arg6[%c0_9, %c0_10] : memref<16x48xf32, #tpu.memory_space<vmem>>, vector<16x48xf32>
    tpu.vector_store %arg6[%c0_9, %c0_10], %11 {strides = array<i32>} : memref<16x48xf32, #tpu.memory_space<vmem>>, vector<16x48xf32>,
    %13 = vector.extract_strided_slice %6 {offsets = [0, 384], sizes = [16, 32], strides = [1, 1]} : vector<16x512xf32> to vector<16x32xf32>
    %c0_11 = arith.constant 0 : index
    %c0_12 = arith.constant 0 : index
    %14 = vector.load %arg7[%c0_11, %c0_12] : memref<16x32xf32, #tpu.memory_space<vmem>>, vector<16x32xf32>
    tpu.vector_store %arg7[%c0_11, %c0_12], %13 {strides = array<i32>} : memref<16x32xf32, #tpu.memory_space<vmem>>, vector<16x32xf32>,
    return
  }
  func.func @transform_0(%arg0: i32) -> (i32, i32) {
    %c0_i32 = arith.constant 0 : i32
    %c0_i32_0 = arith.constant 0 : i32
    return %arg0, %c0_i32 : i32, i32
  }
  func.func @transform_1(%arg0: i32) -> (i32, i32) {
    %c0_i32 = arith.constant 0 : i32
    %c0_i32_0 = arith.constant 0 : i32
    %c0_i32_1 = arith.constant 0 : i32
    return %c0_i32, %c0_i32_0 : i32, i32
  }
  func.func @transform_2(%arg0: i32) -> (i32, i32) {
    %c0_i32 = arith.constant 0 : i32
    %c0_i32_0 = arith.constant 0 : i32
    %c0_i32_1 = arith.constant 0 : i32
    return %c0_i32, %c0_i32_0 : i32, i32
  }
  func.func @transform_3(%arg0: i32) -> (i32, i32) {
    %c0_i32 = arith.constant 0 : i32
    %c0_i32_0 = arith.constant 0 : i32
    return %arg0, %c0_i32 : i32, i32
  }
  func.func @transform_4(%arg0: i32) -> (i32, i32) {
    %c0_i32 = arith.constant 0 : i32
    %c0_i32_0 = arith.constant 0 : i32
    return %arg0, %c0_i32 : i32, i32
  }
  func.func @transform_5(%arg0: i32) -> (i32, i32) {
    %c0_i32 = arith.constant 0 : i32
    %c0_i32_0 = arith.constant 0 : i32
    return %arg0, %c0_i32 : i32, i32
  }
  func.func @transform_6(%arg0: i32) -> (i32, i32) {
    %c0_i32 = arith.constant 0 : i32
    %c0_i32_0 = arith.constant 0 : i32
    return %arg0, %c0_i32 : i32, i32
  }
}

</mosaic_0001>

<llo_original>
// kernel: tpu_custom_call.1
$region0: #{tpu_custom_call.1}
  #allocation0 [shape = 'u32[]', space=smem, size = 0x4, offset = 0x4, fixed_abs, tag = 'smem constant byte address 0x4 - core index']
  #allocation1 [shape = 'u32[72,128]{1,0:T(1,128)}', space=vmem, size = 0x9000, scoped, tag = 'internal scratch']
  %s0 = inlined_call_operand.hbm [shape: f32[16,32], index: 0, kind: input, shape index: {}]
  %s1 = inlined_call_operand.hbm [shape: bf16[32,512], index: 1, kind: input, shape index: {}]
  %s2 = inlined_call_operand.hbm [shape: f32[1,512], index: 2, kind: input, shape index: {}]
  %s3 = inlined_call_operand.hbm [shape: f32[16,16], index: 3, kind: output, shape index: {0}]
  %s4 = inlined_call_operand.hbm [shape: f32[16,24], index: 4, kind: output, shape index: {1}]
  %s5 = inlined_call_operand.hbm [shape: f32[16,48], index: 5, kind: output, shape index: {2}]
  %s6 = inlined_call_operand.hbm [shape: f32[16,32], index: 6, kind: output, shape index: {3}]
  %7 = xla_tuple %s3, %s4, %s5, %s6
  %s8 = sld [smem:[#allocation0]]
  $region58: #{tpu_custom_call.1} parent=0
    _
  %s10 = ssub.s32 1, %s8
  %s11 = scalar_select 0, %s10, %s8
  $region1: #{tpu_custom_call.1} parent=0
    #allocation2 [shape = 'u8[8192]{0}', space=vmem, size = 0x2000, scoped, tag = 'input window, operand 0, single buffered']
    #allocation3 [shape = 's32[1]{0}', space=sflag, size = 0x4, scoped, tag = 'scoped memory for tpu_custom_call.1']
    #allocation4 [shape = 's32[1]{0}', space=sflag, size = 0x4, scoped, tag = 'scoped memory for tpu_custom_call.1']
    #allocation5 [shape = 'u8[32768]{0}', space=vmem, size = 0x8000, scoped, tag = 'input window, operand 1, single buffered']
    #allocation6 [shape = 's32[1]{0}', space=sflag, size = 0x4, scoped, tag = 'scoped memory for tpu_custom_call.1']
    #allocation7 [shape = 'u8[2048]{0}', space=vmem, size = 0x800, scoped, tag = 'input window, operand 2, single buffered']
    #allocation8 [shape = 'u8[8192]{0}', space=vmem, size = 0x2000, scoped, tag = 'output window, operand 0, single buffered']
    #allocation9 [shape = 'u8[8192]{0}', space=vmem, size = 0x2000, scoped, tag = 'output window, operand 1, single buffered']
    #allocation10 [shape = 's32[1]{0}', space=sflag, size = 0x4, scoped, tag = 'scoped memory for tpu_custom_call.1']
    #allocation11 [shape = 'u8[8192]{0}', space=vmem, size = 0x2000, scoped, tag = 'output window, operand 2, single buffered']
    #allocation12 [shape = 'u8[8192]{0}', space=vmem, size = 0x2000, scoped, tag = 'output window, operand 3, single buffered']
    #allocation13 [shape = 's32[1]{0}', space=sflag, size = 0x4, scoped, tag = 'scoped memory for tpu_custom_call.1']
    %12 = vsyncpa [#allocation3], 0
    %13 = vsyncpa [#allocation6], 0
    %14 = vsyncpa [#allocation4], 0
    %15 = vsyncpa [#allocation10], 0
    %16 = vsyncpa [#allocation13], 0
    // Predicated region
    $region2: #{tpu_custom_call.1} parent=1 // pred_check
      _
    $region3: #{tpu_custom_call.1} parent=1 // pred_check_branch
      %18 = sbr.rel (0) target = $region5
    $region4: #{tpu_custom_call.1} parent=1 // pred_region
      %20 = vsyncadd [#allocation3], 0
      %s21 = sshll.u32 %s0, 4
      %s22 = int_to_ptr.hbm [resolvable:$true] %s21
      %s23 = sshll.u32 [#allocation2], 4
      %s24 = int_to_ptr.vmem [resolvable:$true] %s23
      %29 = dma.hbm_to_vmem [thread:$0]  %s22, 256, %s24, [#allocation3], 128, 128, 8
    $region5: #{tpu_custom_call.1} parent=1 // pred_fallthru
      _
    // Predicated region
    $region6: #{tpu_custom_call.1} parent=1 // pred_check
      _
    $region7: #{tpu_custom_call.1} parent=1 // pred_check_branch
      %31 = sbr.rel (0) target = $region9
    $region8: #{tpu_custom_call.1} parent=1 // pred_region
      %33 = vsyncadd [#allocation6], 0
      %s34 = sshll.u32 %s1, 4
      %s35 = int_to_ptr.hbm [resolvable:$true] %s34
      %s36 = sshll.u32 [#allocation5], 4
      %s37 = int_to_ptr.vmem [resolvable:$true] %s36
      %42 = dma.hbm_to_vmem [thread:$0]  %s35, 1024, %s37, [#allocation6], 256, 256, 16
    $region9: #{tpu_custom_call.1} parent=1 // pred_fallthru
      _
    // Predicated region
    $region10: #{tpu_custom_call.1} parent=1 // pred_check
      _
    $region11: #{tpu_custom_call.1} parent=1 // pred_check_branch
      %44 = sbr.rel (0) target = $region13
    $region12: #{tpu_custom_call.1} parent=1 // pred_region
      %46 = vsyncadd [#allocation6], 0
      %s48 = sshll.u32 %s2, 4
      %s49 = int_to_ptr.hbm [resolvable:$true] %s48
      %s50 = sshll.u32 [#allocation7], 4
      %s51 = int_to_ptr.vmem [resolvable:$true] %s50
      %53 = dma.hbm_to_vmem [thread:$0]  %s49, 64, %s51, [#allocation6]
    $region13: #{tpu_custom_call.1} parent=1 // pred_fallthru
      _
    // Predicated region
    $region14: #{tpu_custom_call.1} parent=1 // pred_check
      _
    $region15: #{tpu_custom_call.1} parent=1 // pred_check_branch
      %55 = sbr.rel (0) target = $region17
    $region16: #{tpu_custom_call.1} parent=1 // pred_region
      %57 = dma.done [#allocation3], 256
    $region17: #{tpu_custom_call.1} parent=1 // pred_fallthru
      _
    // Predicated region
    $region18: #{tpu_custom_call.1} parent=1 // pred_check
      _
    $region19: #{tpu_custom_call.1} parent=1 // pred_check_branch
      %59 = sbr.rel (0) target = $region21
    $region20: #{tpu_custom_call.1} parent=1 // pred_region
      %61 = dma.done [#allocation6], 1024
    $region21: #{tpu_custom_call.1} parent=1 // pred_fallthru
      _
    // Predicated region
    $region22: #{tpu_custom_call.1} parent=1 // pred_check
      _
    $region23: #{tpu_custom_call.1} parent=1 // pred_check_branch
      %63 = sbr.rel (0) target = $region25
    $region24: #{tpu_custom_call.1} parent=1 // pred_region
      %65 = dma.done [#allocation6], 64
    $region25: #{tpu_custom_call.1} parent=1 // pred_fallthru
      _
    %v67 = vld [vmem:[#allocation2] sm:$0xff]
    %v68 = vld [vmem:[#allocation2 + $0x8] sm:$0xff]
    %v69 = vpack.c.bf16 %v68, %v67
    %v70 = vld [vmem:[#allocation5] sm:$0xff]
    %v71 = vld [vmem:[#allocation5 + $0x8] sm:$0xff]
    %v72 = vld [vmem:[#allocation5 + $0x10] sm:$0xff]
    %v73 = vld [vmem:[#allocation5 + $0x18] sm:$0xff]
    %v74 = vld [vmem:[#allocation5 + $0x20] sm:$0xff]
    %v75 = vld [vmem:[#allocation5 + $0x28] sm:$0xff]
    %v76 = vld [vmem:[#allocation5 + $0x30] sm:$0xff]
    %v77 = vld [vmem:[#allocation5 + $0x38] sm:$0xff]
    %v78 = vld [vmem:[#allocation7] sm:$0xf]
    %v80 = vperm.slane %v78, 0
    %v81 = vperm.slane %v78, 1
    %v82 = vperm.slane %v78, 2
    %v83 = vperm.slane %v78, 3
    %v96 = vunpack.c.l.b16 %v70
    %v97 = vunpack.c.h.b16 %v70
    %v98 = vunpack.c.l.b16 %v71
    %v99 = vunpack.c.h.b16 %v71
    %v100 = vunpack.c.l.b16 %v72
    %v101 = vunpack.c.h.b16 %v72
    %v102 = vunpack.c.l.b16 %v73
    %v103 = vunpack.c.h.b16 %v73
    %v104 = vunpack.c.l.b16 %v74
    %v105 = vunpack.c.h.b16 %v74
    %v106 = vunpack.c.l.b16 %v75
    %v107 = vunpack.c.h.b16 %v75
    %v108 = vunpack.c.l.b16 %v76
    %v109 = vunpack.c.h.b16 %v76
    %v110 = vunpack.c.l.b16 %v77
    %v111 = vunpack.c.h.b16 %v77
    %v112 = vpack.c.b16 %v100, %v96
    %v113 = vpack.c.b16 %v101, %v97
    %v114 = vpack.c.b16 %v102, %v98
    %v115 = vpack.c.b16 %v103, %v99
    %v116 = vpack.c.b16 %v108, %v104
    %v117 = vpack.c.b16 %v109, %v105
    %v118 = vpack.c.b16 %v110, %v106
    %v119 = vpack.c.b16 %v111, %v107
    %vm128 = vcmask 261120
    %v130 = vsel %vm128, %v69, 0
    %132 = vmatpush.bf16.msra.mxu0 0
    %133 = vmatpush.bf16.msra.mxu0 0
    %134 = vmatpush.bf16.msra.mxu0 0
    %135 = vmatpush.bf16.msra.mxu0 0
    %136 = vmatpush.bf16.msra.mxu0 0
    %137 = vmatpush.bf16.msra.mxu0 0
    %138 = vmatpush.bf16.msra.mxu0 %v116
    %139 = vmatpush.bf16.msra.mxu0 %v112
    %140 = vmatmul.bf16.gmra.mxu0 %v130
    %v141 = vpop.f32.mrf.mxu0
    %v142 = vadd.f32 %v80, %v141
    %v143 = vpop.f32.mrf.mxu0
    %v144 = vadd.f32 %v80, %v143
    %145 = vdwg.mxu0
    %146 = vmatpush.bf16.msra.mxu0 0
    %147 = vmatpush.bf16.msra.mxu0 0
    %148 = vmatpush.bf16.msra.mxu0 0
    %149 = vmatpush.bf16.msra.mxu0 0
    %150 = vmatpush.bf16.msra.mxu0 0
    %151 = vmatpush.bf16.msra.mxu0 0
    %152 = vmatpush.bf16.msra.mxu0 %v117
    %153 = vmatpush.bf16.msra.mxu0 %v113
    %154 = vmatmul.bf16.gmra.mxu0 %v130
    %v155 = vpop.f32.mrf.mxu0
    %v156 = vadd.f32 %v81, %v155
    %v157 = vpop.f32.mrf.mxu0
    %v158 = vadd.f32 %v81, %v157
    %159 = vdwg.mxu0
    %160 = vmatpush.bf16.msra.mxu0 0
    %161 = vmatpush.bf16.msra.mxu0 0
    %162 = vmatpush.bf16.msra.mxu0 0
    %163 = vmatpush.bf16.msra.mxu0 0
    %164 = vmatpush.bf16.msra.mxu0 0
    %165 = vmatpush.bf16.msra.mxu0 0
    %166 = vmatpush.bf16.msra.mxu0 %v118
    %167 = vmatpush.bf16.msra.mxu0 %v114
    %168 = vmatmul.bf16.gmra.mxu0 %v130
    %v169 = vpop.f32.mrf.mxu0
    %v170 = vadd.f32 %v82, %v169
    %v171 = vpop.f32.mrf.mxu0
    %v172 = vadd.f32 %v82, %v171
    %173 = vdwg.mxu0
    %174 = vmatpush.bf16.msra.mxu0 0
    %175 = vmatpush.bf16.msra.mxu0 0
    %176 = vmatpush.bf16.msra.mxu0 0
    %177 = vmatpush.bf16.msra.mxu0 0
    %178 = vmatpush.bf16.msra.mxu0 0
    %179 = vmatpush.bf16.msra.mxu0 0
    %180 = vmatpush.bf16.msra.mxu0 %v119
    %181 = vmatpush.bf16.msra.mxu0 %v115
    %182 = vmatmul.bf16.gmra.mxu0 %v130
    %v183 = vpop.f32.mrf.mxu0
    %v184 = vadd.f32 %v83, %v183
    %v185 = vpop.f32.mrf.mxu0
    %v186 = vadd.f32 %v83, %v185
    %187 = vdwg.mxu0
    %vm188 = vcmask 130048
    %189 = vst.msk [vmem:[#allocation8] sm:$0xff] %vm188, %v142
    %190 = vst.msk [vmem:[#allocation8 + $0x8] sm:$0xff] %vm188, %v144
    %vm191 = vcmask 195584
    %192 = vst.msk [vmem:[#allocation9] sm:$0xff] %vm191, %v156
    %193 = vst.msk [vmem:[#allocation9 + $0x8] sm:$0xff] %vm191, %v158
    %vm194 = vcmask 392192
    %195 = vst.msk [vmem:[#allocation11] sm:$0xff] %vm194, %v170
    %196 = vst.msk [vmem:[#allocation11 + $0x8] sm:$0xff] %vm194, %v172
    %197 = vst.msk [vmem:[#allocation12] sm:$0xff] %vm128, %v184
    %198 = vst.msk [vmem:[#allocation12 + $0x8] sm:$0xff] %vm128, %v186
    // Predicated region
    $region26: #{tpu_custom_call.1} parent=1 // pred_check
      _
    $region27: #{tpu_custom_call.1} parent=1 // pred_check_branch
      %200 = sbr.rel (0) target = $region29
    $region28: #{tpu_custom_call.1} parent=1 // pred_region
      %202 = vsyncadd [#allocation4], 0
      %s203 = sshll.u32 [#allocation8], 4
      %s204 = int_to_ptr.vmem [resolvable:$true] %s203
      %s205 = sshll.u32 %s3, 4
      %s206 = int_to_ptr.hbm [resolvable:$true] %s205
      %211 = dma.vmem_to_hbm [thread:$0]  %s204, 256, %s206, [#allocation4], 128, 128, 8
    $region29: #{tpu_custom_call.1} parent=1 // pred_fallthru
      _
    // Predicated region
    $region30: #{tpu_custom_call.1} parent=1 // pred_check
      _
    $region31: #{tpu_custom_call.1} parent=1 // pred_check_branch
      %213 = sbr.rel (0) target = $region33
    $region32: #{tpu_custom_call.1} parent=1 // pred_region
      %215 = vsyncadd [#allocation10], 0
      %s216 = sshll.u32 [#allocation9], 4
      %s217 = int_to_ptr.vmem [resolvable:$true] %s216
      %s218 = sshll.u32 %s4, 4
      %s219 = int_to_ptr.hbm [resolvable:$true] %s218
      %224 = dma.vmem_to_hbm [thread:$0]  %s217, 256, %s219, [#allocation10], 128, 128, 8
    $region33: #{tpu_custom_call.1} parent=1 // pred_fallthru
      _
    // Predicated region
    $region34: #{tpu_custom_call.1} parent=1 // pred_check
      _
    $region35: #{tpu_custom_call.1} parent=1 // pred_check_branch
      %226 = sbr.rel (0) target = $region37
    $region36: #{tpu_custom_call.1} parent=1 // pred_region
      %228 = vsyncadd [#allocation10], 0
      %s229 = sshll.u32 [#allocation11], 4
      %s230 = int_to_ptr.vmem [resolvable:$true] %s229
      %s231 = sshll.u32 %s5, 4
      %s232 = int_to_ptr.hbm [resolvable:$true] %s231
      %237 = dma.vmem_to_hbm [thread:$0]  %s230, 256, %s232, [#allocation10], 128, 128, 8
    $region37: #{tpu_custom_call.1} parent=1 // pred_fallthru
      _
    // Predicated region
    $region38: #{tpu_custom_call.1} parent=1 // pred_check
      _
    $region39: #{tpu_custom_call.1} parent=1 // pred_check_branch
      %239 = sbr.rel (0) target = $region41
    $region40: #{tpu_custom_call.1} parent=1 // pred_region
      %241 = vsyncadd [#allocation13], 0
      %s242 = sshll.u32 [#allocation12], 4
      %s243 = int_to_ptr.vmem [resolvable:$true] %s242
      %s244 = sshll.u32 %s6, 4
      %s245 = int_to_ptr.hbm [resolvable:$true] %s244
      %250 = dma.vmem_to_hbm [thread:$0]  %s243, 256, %s245, [#allocation13], 128, 128, 8
    $region41: #{tpu_custom_call.1} parent=1 // pred_fallthru
      _
    // Predicated region
    $region42: #{tpu_custom_call.1} parent=1 // pred_check
      _
    $region43: #{tpu_custom_call.1} parent=1 // pred_check_branch
      %252 = sbr.rel (0) target = $region45
    $region44: #{tpu_custom_call.1} parent=1 // pred_region
      %254 = dma.done [#allocation4], 256
    $region45: #{tpu_custom_call.1} parent=1 // pred_fallthru
      _
    // Predicated region
    $region46: #{tpu_custom_call.1} parent=1 // pred_check
      _
    $region47: #{tpu_custom_call.1} parent=1 // pred_check_branch
      %256 = sbr.rel (0) target = $region49
    $region48: #{tpu_custom_call.1} parent=1 // pred_region
      %258 = dma.done [#allocation10], 256
    $region49: #{tpu_custom_call.1} parent=1 // pred_fallthru
      _
    // Predicated region
    $region50: #{tpu_custom_call.1} parent=1 // pred_check
      _
    $region51: #{tpu_custom_call.1} parent=1 // pred_check_branch
      %260 = sbr.rel (0) target = $region53
    $region52: #{tpu_custom_call.1} parent=1 // pred_region
      %262 = dma.done [#allocation10], 256
    $region53: #{tpu_custom_call.1} parent=1 // pred_fallthru
      _
    // Predicated region
    $region54: #{tpu_custom_call.1} parent=1 // pred_check
      _
    $region55: #{tpu_custom_call.1} parent=1 // pred_check_branch
      %264 = sbr.rel (0) target = $region57
    $region56: #{tpu_custom_call.1} parent=1 // pred_region
      %266 = dma.done [#allocation13], 256
    $region57: #{tpu_custom_call.1} parent=1 // pred_fallthru
      _
    %267 = vsyncpa [#allocation3], 1
    %268 = vsyncpa [#allocation6], 1
    %269 = vsyncpa [#allocation4], 1
    %270 = vsyncpa [#allocation10], 1
    %271 = vsyncpa [#allocation13], 1

</llo_original>
